<compile_context>
chip_gen: v7x
topology: tpu7x:2x2x1
jax: 0.10.0
libtpu: 0.0.40
codegen_flags: <defaults>
</compile_context>

<pallas_src>
import functools

import jax
import jax.numpy as jnp
from jax.experimental import pallas as pl
from jax.experimental.pallas import tpu as pltpu


_GP = 128  # padded group-axis width for the indicator matmuls (lane aligned)


def _expand_shuffle_norm_kernel(x_ref, w_ref, gs_ref, gt_ref, gtg_ref, b_ref,
                                o_ref, *, eps):
    """One grid step = one (row-tile, p1) slab of the expanded/shuffled output.

    x_ref:   (R, dim)         tokens; rows are flattened (b, h, w)
    w_ref:   (dim, csz)       p1-th column slab of the expand weight (in, out)
    gs_ref:  (csz, GP)        per-group averaging matrix (1/dim indicator, 0-pad)
    gt_ref:  (GP, csz)        group -> channel broadcast indicator (0-pad)
    gtg_ref: (GP, csz)        broadcast indicator with LayerNorm gamma folded in
    b_ref:   (1, csz)         LayerNorm beta tiled over the groups
    o_ref:   (tbh, 1, W, csz) output slab, already in pixel-shuffled layout
    """
    tbh, _, W, csz = o_ref.shape
    x = x_ref[...]
    # MXU: one p1 slab of the 16x channel expansion, f32 accumulation.
    y = jnp.dot(x, w_ref[...], preferred_element_type=jnp.float32)        # (R, csz)
    # Per-group (LayerNorm over dim channels) moments via lane-dense indicator
    # matmuls -- no (R, groups, dim) lane-splitting reshape / relayout copies.
    mean_g = jnp.dot(y, gs_ref[...], preferred_element_type=jnp.float32)  # (R, GP)
    c = y - jnp.dot(mean_g, gt_ref[...], preferred_element_type=jnp.float32)
    var_g = jnp.dot(c * c, gs_ref[...], preferred_element_type=jnp.float32)
    scale_g = jax.lax.rsqrt(var_g + eps)                                  # EUP
    # Single fused epilogue: gamma pre-folded into gtg_ref, beta added last,
    # dtype cast folded into the store.
    out = c * jnp.dot(scale_g, gtg_ref[...], preferred_element_type=jnp.float32)
    out = out + b_ref[...]
    # TODO(synk): on v6e/v7x a bf16 affine epilogue (when o_ref is bf16) would
    # halve VPU/store work of this last pass; kept f32 so v5e stays optimal.
    o_ref[...] = out.astype(o_ref.dtype).reshape(tbh, 1, W, csz)


def _vmem_plan():
    """Generation-aware (tiling_budget, mosaic_vmem_limit) in bytes."""
    cap = 64 * 1024 * 1024                    # conservative default (v7x-sized)
    try:                                       # narrow guard: hardware query only
        info = pltpu.get_tpu_info()
        cap = int(getattr(info, "vmem_capacity_bytes", cap)) or cap
    except Exception:
        pass
    if cap >= 100 * 1024 * 1024:               # v5e / v6e: 128 MiB physical VMEM
        return 64 * 1024 * 1024, 96 * 1024 * 1024
    return 26 * 1024 * 1024, 48 * 1024 * 1024  # v7x: 64 MiB physical VMEM


def _choose_bh_tile(bh, W, dim, p, in_bytes, w_bytes, out_bytes, budget,
                    max_rows):
    """Largest divisor of B*H whose (rows x p1-slab) working set fits `budget`.

    Keeps tile_rows (= bh_tile * W) a multiple of 8 (sublane tiling) and
    prefers >= 2 outer grid steps so both v7x TensorCores get work (the p1
    grid axis already guarantees >= p steps overall).
    """
    csz = p * dim

    def fits(d):
        rows = d * W
        if rows % 8 != 0 and d != bh:
            return False
        if rows > max_rows:
            return False
        need = (2 * rows * dim * in_bytes        # input block (double buffered)
                + 2 * rows * csz * out_bytes     # output slab (double buffered)
                + 8 * rows * csz * 4             # f32 intermediates (y, c, ...)
                + 2 * dim * csz * w_bytes        # weight slab (double buffered)
                + 6 * csz * _GP * 4              # indicator matrices
                + (1 << 20))                     # headroom
        return need <= budget

    divisors = [d for d in range(1, bh + 1) if bh % d == 0]
    fitting = [d for d in divisors if fits(d)]
    if fitting:
        multi = [d for d in fitting if bh // d >= 2]
        return max(multi) if multi else max(fitting)
    # Correctness-first fallback: the smallest sublane-aligned divisor (never
    # the whole array, which could blow past the VMEM limit).
    for d in divisors:
        if (d * W) % 8 == 0 or d == bh:
            return d
    return bh


def final_patch_expand_x4(x, w_expand, gamma, beta, *, input_resolution, dim,
                          dim_scale=4, eps=1e-5, out_dtype=None, bh_tile=None):
    """Pallas TPU implementation of FinalPatchExpand_X4.forward.

    x:        (B, H*W, dim)
    w_expand: (dim, dim_scale**2 * dim) -- Linear(dim, 16*dim, bias=False)
              weight transposed to (in, out) layout so the kernel does x @ W
    gamma, beta: (dim,)  LayerNorm affine parameters
    returns:  (B, dim_scale**2 * H * W, dim) in `out_dtype` (default x.dtype)
    """
    H, W = input_resolution
    B, L, C = x.shape
    assert L == H * W, "input feature has wrong size"
    assert C == dim
    p = dim_scale
    csz = p * dim                     # channels per p1 slab (= p2 * dim)
    out_c = p * p * dim
    assert w_expand.shape == (dim, out_c)
    out_dtype = x.dtype if out_dtype is None else jnp.dtype(out_dtype)

    bh = B * H
    rows_total = bh * W
    x_flat = x.reshape(rows_total, dim)

    # Weight in pixel-shuffle-friendly layout: w3[p1] == W[:, p1*csz:(p1+1)*csz].
    w3 = w_expand.reshape(dim, p, csz).transpose(1, 0, 2)          # (p, dim, csz)

    # Group indicator matrices (0-padded to _GP columns/rows; padded groups have
    # zero weight so they never contribute).
    gid = jnp.arange(csz, dtype=jnp.int32) // dim                   # (csz,)
    onehot = gid[:, None] == jnp.arange(_GP, dtype=jnp.int32)[None, :]
    gs = onehot.astype(jnp.float32) * (1.0 / dim)                   # (csz, GP)
    gt = onehot.T.astype(jnp.float32)                               # (GP, csz)
    gamma_t = jnp.tile(gamma.astype(jnp.float32), p)                # (csz,)
    gtg = gt * gamma_t[None, :]                                     # broadcast * gamma
    beta_t = jnp.tile(beta.astype(jnp.float32), p).reshape(1, csz)

    budget, vmem_limit = _vmem_plan()
    max_rows = 4096 if budget >= 48 * 1024 * 1024 else 2048
    if bh_tile is None:
        bh_tile = _choose_bh_tile(bh, W, dim, p, x.dtype.itemsize,
                                  w_expand.dtype.itemsize,
                                  jnp.dtype(out_dtype).itemsize,
                                  budget, max_rows)
    assert bh % bh_tile == 0
    grid = (bh // bh_tile, p)
    tile_rows = bh_tile * W

    kernel = functools.partial(_expand_shuffle_norm_kernel, eps=eps)

    cost = pl.CostEstimate(
        flops=2 * rows_total * dim * out_c + 24 * rows_total * out_c,
        transcendentals=rows_total * p * p,
        bytes_accessed=(rows_total * dim * x.dtype.itemsize
                        + dim * out_c * w_expand.dtype.itemsize
                        + rows_total * out_c * jnp.dtype(out_dtype).itemsize),
    )

    y = pl.pallas_call(
        kernel,
        out_shape=jax.ShapeDtypeStruct((bh, p, W, csz), out_dtype),
        grid_spec=pltpu.PrefetchScalarGridSpec(
            num_scalar_prefetch=0,
            grid=grid,
            in_specs=[
                pl.BlockSpec((tile_rows, dim), lambda i, j: (i, 0)),
                pl.BlockSpec((None, dim, csz), lambda i, j: (j, 0, 0)),
                pl.BlockSpec((csz, _GP), lambda i, j: (0, 0)),
                pl.BlockSpec((_GP, csz), lambda i, j: (0, 0)),
                pl.BlockSpec((_GP, csz), lambda i, j: (0, 0)),
                pl.BlockSpec((1, csz), lambda i, j: (0, 0)),
            ],
            out_specs=pl.BlockSpec((bh_tile, 1, W, csz),
                                   lambda i, j: (i, j, 0, 0)),
        ),
        compiler_params=pltpu.CompilerParams(
            dimension_semantics=("parallel", "parallel"),
            vmem_limit_bytes=vmem_limit),
        cost_estimate=cost,
    )(x_flat, w3, gs, gt, gtg, beta_t)

    # Free row-major reshape: (B*H, p1, W, p2*dim) == 'b (h p1) (w p2) c'.
    # TODO(synk): when W % 8 != 0 the per-slab stores are sublane-masked; a
    # W-padded output layout (stripped here) would make them fully dense.
    return y.reshape(B, H * p * W * p, dim)


def _reference(x, w_expand, gamma, beta, *, input_resolution, dim,
               dim_scale=4, eps=1e-5):
    """Pure-JAX reference mirroring the PyTorch forward (f32)."""
    H, W = input_resolution
    B, L, C = x.shape
    y = x.astype(jnp.float32) @ w_expand.astype(jnp.float32)       # (B, L, 16*dim)
    y = y.reshape(B, H, W, dim_scale, dim_scale, dim)
    y = y.transpose(0, 1, 3, 2, 4, 5)
    y = y.reshape(B, H * dim_scale * W * dim_scale, dim)
    mean = jnp.mean(y, axis=-1, keepdims=True)
    var = jnp.mean((y - mean) ** 2, axis=-1, keepdims=True)
    y = (y - mean) * jax.lax.rsqrt(var + eps)
    return y * gamma + beta


if __name__ == "__main__":
    # Small shapes consistent with the module: B=2, H=W=8, dim=32.
    B, H, W, dim = 2, 8, 8, 32
    dim_scale = 4
    L = H * W

    key = jax.random.PRNGKey(0)
    kx, kw, kg, kb = jax.random.split(key, 4)

    x = jax.random.normal(kx, (B, L, dim), dtype=jnp.float32)
    # Linear(dim, 16*dim, bias=False): PyTorch weight is (16*dim, dim);
    # we store its transpose (dim, 16*dim) so the kernel does x @ W.
    w_expand = (jax.random.normal(kw, (dim, 16 * dim), dtype=jnp.float32)
                * (1.0 / jnp.sqrt(dim)))
    gamma = 1.0 + 0.1 * jax.random.normal(kg, (dim,), dtype=jnp.float32)
    beta = 0.1 * jax.random.normal(kb, (dim,), dtype=jnp.float32)

    ref = _reference(x, w_expand, gamma, beta,
                     input_resolution=(H, W), dim=dim, dim_scale=dim_scale)

    # f32 path (tight correctness check).
    out = final_patch_expand_x4(
        x, w_expand, gamma, beta,
        input_resolution=(H, W), dim=dim, dim_scale=dim_scale)
    out = jax.block_until_ready(out)
    assert out.shape == (B, dim_scale * H * dim_scale * W, dim), out.shape
    assert jnp.allclose(out, ref, atol=2e-4, rtol=2e-4), (
        float(jnp.max(jnp.abs(out - ref))))

    # bf16 in/out path: halves the dominant 16x HBM writeback (and input)
    # traffic; accumulation + LayerNorm stay in f32 inside the kernel.
    out_bf16 = final_patch_expand_x4(
        x.astype(jnp.bfloat16), w_expand.astype(jnp.bfloat16), gamma, beta,
        input_resolution=(H, W), dim=dim, dim_scale=dim_scale,
        out_dtype=jnp.bfloat16)
    out_bf16 = jax.block_until_ready(out_bf16)
    assert out_bf16.dtype == jnp.bfloat16
    assert jnp.allclose(out_bf16.astype(jnp.float32), ref,
                        atol=0.1, rtol=0.1), (
        float(jnp.max(jnp.abs(out_bf16.astype(jnp.float32) - ref))))

    print("KERNEL_OK")
</pallas_src>

<mosaic_0001>
module attributes {stable_mosaic.version = 11 : i64} {
  func.func @_expand_shuffle_norm_kernel(%arg0: i32, %arg1: i32, %arg2: memref<64x32xf32, #tpu.memory_space<vmem>>, %arg3: memref<1x32x128xf32, #tpu.memory_space<vmem>>, %arg4: memref<128x128xf32, #tpu.memory_space<vmem>>, %arg5: memref<128x128xf32, #tpu.memory_space<vmem>>, %arg6: memref<128x128xf32, #tpu.memory_space<vmem>>, %arg7: memref<1x128xf32, #tpu.memory_space<vmem>>, %arg8: memref<8x1x8x128xf32, #tpu.memory_space<vmem>>) attributes {dimension_semantics = [#tpu.dimension_semantics<parallel>, #tpu.dimension_semantics<parallel>], iteration_bounds = array<i64: 2, 4>, scalar_prefetch = 0 : i64, scratch_operands = 0 : i64, tpu.core_type = #tpu.core_type<tc>, window_params = [{transform_indices = @transform_0, window_bounds = array<i64: 64, 32>}, {transform_indices = @transform_1, window_bounds = array<i64: 1, 32, 128>}, {pipeline_mode = #tpu.pipeline_mode<synchronous>, transform_indices = @transform_2, window_bounds = array<i64: 128, 128>}, {pipeline_mode = #tpu.pipeline_mode<synchronous>, transform_indices = @transform_3, window_bounds = array<i64: 128, 128>}, {pipeline_mode = #tpu.pipeline_mode<synchronous>, transform_indices = @transform_4, window_bounds = array<i64: 128, 128>}, {pipeline_mode = #tpu.pipeline_mode<synchronous>, transform_indices = @transform_5, window_bounds = array<i64: 1, 128>}, {transform_indices = @transform_6, window_bounds = array<i64: 8, 1, 8, 128>}]} {
    %c0 = arith.constant 0 : index
    %c0_0 = arith.constant 0 : index
    %0 = vector.load %arg2[%c0, %c0_0] : memref<64x32xf32, #tpu.memory_space<vmem>>, vector<64x32xf32>
    %c0_1 = arith.constant 0 : index
    %c0_2 = arith.constant 0 : index
    %c0_3 = arith.constant 0 : index
    %1 = vector.load %arg3[%c0_1, %c0_2, %c0_3] : memref<1x32x128xf32, #tpu.memory_space<vmem>>, vector<1x32x128xf32>
    %2 = vector.shape_cast %1 : vector<1x32x128xf32> to vector<32x128xf32>
    %cst = arith.constant dense<0.000000e+00> : vector<64x128xf32>
    %3 = tpu.matmul %0, %2, %cst {dimension_numbers = #tpu.dot_dimension_numbers<[1], [0], [0], [1], [0, 0, 1, 1], [], []>} : vector<64x32xf32>, vector<32x128xf32>, vector<64x128xf32> -> vector<64x128xf32>
    %c0_4 = arith.constant 0 : index
    %c0_5 = arith.constant 0 : index
    %4 = vector.load %arg4[%c0_4, %c0_5] : memref<128x128xf32, #tpu.memory_space<vmem>>, vector<128x128xf32>
    %cst_6 = arith.constant dense<0.000000e+00> : vector<64x128xf32>
    %5 = tpu.matmul %3, %4, %cst_6 {dimension_numbers = #tpu.dot_dimension_numbers<[1], [0], [0], [1], [0, 0, 1, 1], [], []>} : vector<64x128xf32>, vector<128x128xf32>, vector<64x128xf32> -> vector<64x128xf32>
    %c0_7 = arith.constant 0 : index
    %c0_8 = arith.constant 0 : index
    %6 = vector.load %arg5[%c0_7, %c0_8] : memref<128x128xf32, #tpu.memory_space<vmem>>, vector<128x128xf32>
    %cst_9 = arith.constant dense<0.000000e+00> : vector<64x128xf32>
    %7 = tpu.matmul %5, %6, %cst_9 {dimension_numbers = #tpu.dot_dimension_numbers<[1], [0], [0], [1], [0, 0, 1, 1], [], []>} : vector<64x128xf32>, vector<128x128xf32>, vector<64x128xf32> -> vector<64x128xf32>
    %8 = arith.subf %3, %7 : vector<64x128xf32>
    %9 = arith.mulf %8, %8 : vector<64x128xf32>
    %c0_10 = arith.constant 0 : index
    %c0_11 = arith.constant 0 : index
    %10 = vector.load %arg4[%c0_10, %c0_11] : memref<128x128xf32, #tpu.memory_space<vmem>>, vector<128x128xf32>
    %cst_12 = arith.constant dense<0.000000e+00> : vector<64x128xf32>
    %11 = tpu.matmul %9, %10, %cst_12 {dimension_numbers = #tpu.dot_dimension_numbers<[1], [0], [0], [1], [0, 0, 1, 1], [], []>} : vector<64x128xf32>, vector<128x128xf32>, vector<64x128xf32> -> vector<64x128xf32>
    %cst_13 = arith.constant 9.99999974E-6 : f32
    %12 = vector.broadcast %cst_13 : f32 to vector<64x128xf32>
    %13 = arith.addf %11, %12 : vector<64x128xf32>
    %14 = math.rsqrt %13 : vector<64x128xf32>
    %c0_14 = arith.constant 0 : index
    %c0_15 = arith.constant 0 : index
    %15 = vector.load %arg6[%c0_14, %c0_15] : memref<128x128xf32, #tpu.memory_space<vmem>>, vector<128x128xf32>
    %cst_16 = arith.constant dense<0.000000e+00> : vector<64x128xf32>
    %16 = tpu.matmul %14, %15, %cst_16 {dimension_numbers = #tpu.dot_dimension_numbers<[1], [0], [0], [1], [0, 0, 1, 1], [], []>} : vector<64x128xf32>, vector<128x128xf32>, vector<64x128xf32> -> vector<64x128xf32>
    %17 = arith.mulf %8, %16 : vector<64x128xf32>
    %c0_17 = arith.constant 0 : index
    %c0_18 = arith.constant 0 : index
    %18 = vector.load %arg7[%c0_17, %c0_18] : memref<1x128xf32, #tpu.memory_space<vmem>>, vector<1x128xf32>
    %19 = vector.broadcast %18 : vector<1x128xf32> to vector<64x128xf32>
    %20 = arith.addf %17, %19 : vector<64x128xf32>
    %21 = vector.shape_cast %20 : vector<64x128xf32> to vector<8x1x8x128xf32>
    %c0_19 = arith.constant 0 : index
    %c0_20 = arith.constant 0 : index
    %c0_21 = arith.constant 0 : index
    %c0_22 = arith.constant 0 : index
    %22 = vector.load %arg8[%c0_19, %c0_20, %c0_21, %c0_22] : memref<8x1x8x128xf32, #tpu.memory_space<vmem>>, vector<8x1x8x128xf32>
    tpu.vector_store %arg8[%c0_19, %c0_20, %c0_21, %c0_22], %21 {strides = array<i32>} : memref<8x1x8x128xf32, #tpu.memory_space<vmem>>, vector<8x1x8x128xf32>,
    return
  }
  func.func @transform_0(%arg0: i32, %arg1: i32) -> (i32, i32) {
    %c0_i32 = arith.constant 0 : i32
    %c0_i32_0 = arith.constant 0 : i32
    return %arg0, %c0_i32 : i32, i32
  }
  func.func @transform_1(%arg0: i32, %arg1: i32) -> (i32, i32, i32) {
    %c0_i32 = arith.constant 0 : i32
    %c0_i32_0 = arith.constant 0 : i32
    %c0_i32_1 = arith.constant 0 : i32
    return %arg1, %c0_i32, %c0_i32_0 : i32, i32, i32
  }
  func.func @transform_2(%arg0: i32, %arg1: i32) -> (i32, i32) {
    %c0_i32 = arith.constant 0 : i32
    %c0_i32_0 = arith.constant 0 : i32
    %c0_i32_1 = arith.constant 0 : i32
    return %c0_i32, %c0_i32_0 : i32, i32
  }
  func.func @transform_3(%arg0: i32, %arg1: i32) -> (i32, i32) {
    %c0_i32 = arith.constant 0 : i32
    %c0_i32_0 = arith.constant 0 : i32
    %c0_i32_1 = arith.constant 0 : i32
    return %c0_i32, %c0_i32_0 : i32, i32
  }
  func.func @transform_4(%arg0: i32, %arg1: i32) -> (i32, i32) {
    %c0_i32 = arith.constant 0 : i32
    %c0_i32_0 = arith.constant 0 : i32
    %c0_i32_1 = arith.constant 0 : i32
    return %c0_i32, %c0_i32_0 : i32, i32
  }
  func.func @transform_5(%arg0: i32, %arg1: i32) -> (i32, i32) {
    %c0_i32 = arith.constant 0 : i32
    %c0_i32_0 = arith.constant 0 : i32
    %c0_i32_1 = arith.constant 0 : i32
    return %c0_i32, %c0_i32_0 : i32, i32
  }
  func.func @transform_6(%arg0: i32, %arg1: i32) -> (i32, i32, i32, i32) {
    %c0_i32 = arith.constant 0 : i32
    %c0_i32_0 = arith.constant 0 : i32
    %c0_i32_1 = arith.constant 0 : i32
    return %arg0, %arg1, %c0_i32, %c0_i32_0 : i32, i32, i32, i32
  }
}

</mosaic_0001>

<llo_original>
// kernel: tpu_custom_call.1
$region0: #{tpu_custom_call.1}
  #allocation0 [shape = 'u32[]', space=smem, size = 0x4, offset = 0x4, fixed_abs, tag = 'smem constant byte address 0x4 - core index']
  #allocation1 [shape = 'u32[144,128]{1,0:T(1,128)}', space=vmem, size = 0x12000, scoped, tag = 'internal scratch']
  %s0 = inlined_call_operand.vmem [shape: f32[128,32], index: 0, kind: input, shape index: {}]
  %s1 = inlined_call_operand.vmem [shape: f32[4,32,128], index: 1, kind: input, shape index: {}]
  %s2 = inlined_call_operand.hbm [shape: f32[128,128], index: 2, kind: input, shape index: {}]
  %s3 = inlined_call_operand.hbm [shape: f32[128,128], index: 3, kind: input, shape index: {}]
  %s4 = inlined_call_operand.hbm [shape: f32[128,128], index: 4, kind: input, shape index: {}]
  %s5 = inlined_call_operand.vmem [shape: f32[1,128], index: 5, kind: input, shape index: {}]
  %s6 = inlined_call_operand.hbm [shape: f32[16,4,8,128], index: 6, kind: output, shape index: {}]
  %s7 = sld [smem:[#allocation0]]
  $region69: #{tpu_custom_call.1} parent=0
    _
  %s9 = ssub.s32 1, %s7
  %s10 = scalar_select 0, %s9, %s7
  $region1: #{tpu_custom_call.1} parent=0
    #allocation2 [shape = 'u8[65536]{0}', space=vmem, size = 0x10000, scoped, tag = 'input window, operand 2, single buffered']
    #allocation3 [shape = 's32[2]{0}', space=sflag, size = 0x8, scoped, tag = 'scoped memory for tpu_custom_call.1']
    #allocation4 [shape = 's32[2]{0}', space=sflag, size = 0x8, scoped, tag = 'scoped memory for tpu_custom_call.1']
    #allocation5 [shape = 'u8[65536]{0}', space=vmem, size = 0x10000, scoped, tag = 'input window, operand 3, single buffered']
    #allocation6 [shape = 's32[1]{0}', space=sflag, size = 0x4, scoped, tag = 'scoped memory for tpu_custom_call.1']
    #allocation7 [shape = 'u8[65536]{0}', space=vmem, size = 0x10000, scoped, tag = 'input window, operand 4, single buffered']
    #allocation8 [shape = 'u8[65536]{0}', space=vmem, size = 0x10000, scoped, tag = 'output window, operand 0']
    %11 = vsyncpa [#allocation3], 0
    %12 = vsyncpa [#allocation6], 0
    %13 = vsyncpa [#allocation4], 0
    %s14 = scalar_lea.sflag [#allocation4], 1
    %15 = vsyncpa %s14, 0
    loop: start=0, step=1, limit=10
    $region2: #{tpu_custom_call.1} parent=1 // loop_pre_header
      _
    $region3: #{tpu_custom_call.1} parent=1 // loop_header
      %s17 = sphi 0, %s21
      %p18 = scmp.ge.s32.totalorder %s17, 10
      %s24 = sphi 0, %s36
      %s25 = sphi 0, %s32
      %s26 = sphi 0, %s24
      %s27 = sphi 0, %s25
      %s28 = sphi 0, %s26
      %s29 = sphi 0, %s27
      %s39 = sphi 0, %s41
      %s42 = sphi 0, %s39
      %s43 = sphi 0, %s42
      %s59 = sphi 0, %s43
      %s65 = sphi 0, %s67
      %s68 = sphi 0, %s65
      %s69 = sphi 0, %s68
      %s85 = sphi 0, %s69
      %s89 = sphi 0, %s89
      %s91 = sphi 0, %s89
      %s92 = sphi 0, %s91
      %s106 = sphi 0, %s92
      %s110 = sphi 0, %s110
      %s112 = sphi 0, %s110
      %s113 = sphi 0, %s112
      %s127 = sphi 0, %s113
      %s131 = sphi 0, %s131
      %s133 = sphi 0, %s131
      %s134 = sphi 0, %s133
      %s148 = sphi 0, %s134
      %s152 = sphi 0, %s152
      %s154 = sphi 0, %s152
      %s155 = sphi 0, %s154
      %s169 = sphi 0, %s155
      %s177 = sphi 0, %s179
      %s180 = sphi 0, %s177
      %s181 = sphi 0, %s180
      %s197 = sphi 0, %s181
    $region4: #{tpu_custom_call.1} parent=1 // loop_header_branch
      %20 = sbr.rel (%p18) target = $region8
    $region5: #{tpu_custom_call.1} parent=1 // loop_body
      %s22 = ssub.s32 %s17, 1
      %s23 = ssub.s32 %s17, 2
      %s30 = sadd.s32 1, %s25
      %p31 = scmp.ge.s32.totalorder %s30, 4
      %s32 = scalar_select %p31, 0, %s30
      %s33 = sadd.s32 1, %s24
      %s34 = scalar_select %p31, %s33, %s24
      %p35 = scmp.ge.s32.totalorder %s34, 2
      %s36 = scalar_select %p35, 0, %s34
      %s37 = ssub.s32 %s24, %s36
      %p38 = scmp.eq.s32.totalorder %s37, 0
      %s40 = sadd.s32 %s39, 1
      %s41 = scalar_select %p38, %s39, %s40
      %p44 = pneg %p38
      %p45 = scmp.eq.s32.totalorder %s17, 7
      %p46 = por %p44, %p45
      %p47 = scmp.ne.s32.totalorder %s39, %s42
      %p48 = scmp.eq.s32.totalorder %s17, 0
      %p49 = por %p47, %p48
      %p50 = scmp.ne.s32.totalorder %s39, %s42
      %p51 = scmp.eq.s32.totalorder %s22, 7
      %p52 = por %p50, %p51
      %p53 = scmp.ne.s32.totalorder %s42, %s43
      %p54 = scmp.eq.s32.totalorder %s22, 0
      %p55 = por %p53, %p54
      %p56 = scmp.ne.s32.totalorder %s42, %s43
      %p57 = scmp.eq.s32.totalorder %s23, 7
      %p58 = por %p56, %p57
      %p60 = scmp.ne.s32.totalorder %s43, %s59
      %p61 = scmp.eq.s32.totalorder %s23, 0
      %p62 = por %p60, %p61
      %s63 = ssub.s32 %s25, %s32
      %p64 = scmp.eq.s32.totalorder %s63, 0
      %s66 = sadd.s32 %s65, 1
      %s67 = scalar_select %p64, %s65, %s66
      %p70 = pneg %p64
      %p71 = scmp.eq.s32.totalorder %s17, 7
      %p72 = por %p70, %p71
      %p73 = scmp.ne.s32.totalorder %s65, %s68
      %p74 = scmp.eq.s32.totalorder %s17, 0
      %p75 = por %p73, %p74
      %p76 = scmp.ne.s32.totalorder %s65, %s68
      %p77 = scmp.eq.s32.totalorder %s22, 7
      %p78 = por %p76, %p77
      %p79 = scmp.ne.s32.totalorder %s68, %s69
      %p80 = scmp.eq.s32.totalorder %s22, 0
      %p81 = por %p79, %p80
      %p82 = scmp.ne.s32.totalorder %s68, %s69
      %p83 = scmp.eq.s32.totalorder %s23, 7
      %p84 = por %p82, %p83
      %p86 = scmp.ne.s32.totalorder %s69, %s85
      %p87 = scmp.eq.s32.totalorder %s23, 0
      %p88 = por %p86, %p87
      %s90 = sadd.s32 %s89, 1
      %p93 = scmp.eq.s32.totalorder %s17, 7
      %p94 = scmp.ne.s32.totalorder %s89, %s91
      %p95 = scmp.eq.s32.totalorder %s17, 0
      %p96 = por %p94, %p95
      %p97 = scmp.ne.s32.totalorder %s89, %s91
      %p98 = scmp.eq.s32.totalorder %s22, 7
      %p99 = por %p97, %p98
      %p100 = scmp.ne.s32.totalorder %s91, %s92
      %p101 = scmp.eq.s32.totalorder %s22, 0
      %p102 = por %p100, %p101
      %p103 = scmp.ne.s32.totalorder %s91, %s92
      %p104 = scmp.eq.s32.totalorder %s23, 7
      %p105 = por %p103, %p104
      %p107 = scmp.ne.s32.totalorder %s92, %s106
      %p108 = scmp.eq.s32.totalorder %s23, 0
      %p109 = por %p107, %p108
      %s111 = sadd.s32 %s110, 1
      %p114 = scmp.eq.s32.totalorder %s17, 7
      %p115 = scmp.ne.s32.totalorder %s110, %s112
      %p116 = scmp.eq.s32.totalorder %s17, 0
      %p117 = por %p115, %p116
      %p118 = scmp.ne.s32.totalorder %s110, %s112
      %p119 = scmp.eq.s32.totalorder %s22, 7
      %p120 = por %p118, %p119
      %p121 = scmp.ne.s32.totalorder %s112, %s113
      %p122 = scmp.eq.s32.totalorder %s22, 0
      %p123 = por %p121, %p122
      %p124 = scmp.ne.s32.totalorder %s112, %s113
      %p125 = scmp.eq.s32.totalorder %s23, 7
      %p126 = por %p124, %p125
      %p128 = scmp.ne.s32.totalorder %s113, %s127
      %p129 = scmp.eq.s32.totalorder %s23, 0
      %p130 = por %p128, %p129
      %s132 = sadd.s32 %s131, 1
      %p135 = scmp.eq.s32.totalorder %s17, 7
      %p136 = scmp.ne.s32.totalorder %s131, %s133
      %p137 = scmp.eq.s32.totalorder %s17, 0
      %p138 = por %p136, %p137
      %p139 = scmp.ne.s32.totalorder %s131, %s133
      %p140 = scmp.eq.s32.totalorder %s22, 7
      %p141 = por %p139, %p140
      %p142 = scmp.ne.s32.totalorder %s133, %s134
      %p143 = scmp.eq.s32.totalorder %s22, 0
      %p144 = por %p142, %p143
      %p145 = scmp.ne.s32.totalorder %s133, %s134
      %p146 = scmp.eq.s32.totalorder %s23, 7
      %p147 = por %p145, %p146
      %p149 = scmp.ne.s32.totalorder %s134, %s148
      %p150 = scmp.eq.s32.totalorder %s23, 0
      %p151 = por %p149, %p150
      %s153 = sadd.s32 %s152, 1
      %p156 = scmp.eq.s32.totalorder %s17, 7
      %p157 = scmp.ne.s32.totalorder %s152, %s154
      %p158 = scmp.eq.s32.totalorder %s17, 0
      %p159 = por %p157, %p158
      %p160 = scmp.ne.s32.totalorder %s152, %s154
      %p161 = scmp.eq.s32.totalorder %s22, 7
      %p162 = por %p160, %p161
      %p163 = scmp.ne.s32.totalorder %s154, %s155
      %p164 = scmp.eq.s32.totalorder %s22, 0
      %p165 = por %p163, %p164
      %p166 = scmp.ne.s32.totalorder %s154, %s155
      %p167 = scmp.eq.s32.totalorder %s23, 7
      %p168 = por %p166, %p167
      %p170 = scmp.ne.s32.totalorder %s155, %s169
      %p171 = scmp.eq.s32.totalorder %s23, 0
      %p172 = por %p170, %p171
      %s173 = ssub.s32 %s24, %s36
      %s174 = ssub.s32 %s25, %s32
      %s175 = sor.u32 %s173, %s174
      %p176 = scmp.eq.s32.totalorder %s175, 0
      %s178 = sadd.s32 %s177, 1
      %s179 = scalar_select %p176, %s177, %s178
      %p182 = pneg %p176
      %p183 = scmp.eq.s32.totalorder %s17, 7
      %p184 = por %p182, %p183
      %p185 = scmp.ne.s32.totalorder %s177, %s180
      %p186 = scmp.eq.s32.totalorder %s17, 0
      %p187 = por %p185, %p186
      %p188 = scmp.ne.s32.totalorder %s177, %s180
      %p189 = scmp.eq.s32.totalorder %s22, 7
      %p190 = por %p188, %p189
      %p191 = scmp.ne.s32.totalorder %s180, %s181
      %p192 = scmp.eq.s32.totalorder %s22, 0
      %p193 = por %p191, %p192
      %p194 = scmp.ne.s32.totalorder %s180, %s181
      %p195 = scmp.eq.s32.totalorder %s23, 7
      %p196 = por %p194, %p195
      %p198 = scmp.ne.s32.totalorder %s181, %s197
      %p199 = scmp.eq.s32.totalorder %s23, 0
      %p200 = por %p198, %p199
      %p201 = scmp.le.s32.totalorder 1, %s17
      %p202 = scmp.lt.s32.totalorder %s17, 9
      %p203 = pnand %p201, %p202
      %p204 = pneg %p203
      // Predicated region
      $region9: #{tpu_custom_call.1} parent=5 // pred_check
        _
      $region10: #{tpu_custom_call.1} parent=5 // pred_check_branch
        %206 = sbr.rel (%p203) target = $region12
      $region11: #{tpu_custom_call.1} parent=5 // pred_region
        %s207 = ssub.s32 %s17, 1
        // Predicated region
        $region13: #{tpu_custom_call.1} parent=11 // pred_check
          %p208 = pneg %p102
        $region14: #{tpu_custom_call.1} parent=11 // pred_check_branch
          %210 = sbr.rel (%p208) target = $region16
        $region15: #{tpu_custom_call.1} parent=11 // pred_region
          %s212 = ssub.s32 2048, 2048
          %213 = vsyncadd [#allocation3], %s212
          %s214 = sshll.u32 [#allocation2], 4
          %s215 = int_to_ptr.vmem [resolvable:$true] %s214
          %220 = dma.hbm_to_vmem [thread:$0]  %s2, 2048, %s215, [#allocation3], 128, 128, 8
        $region16: #{tpu_custom_call.1} parent=11 // pred_fallthru
          _
        // Predicated region
        $region17: #{tpu_custom_call.1} parent=11 // pred_check
          %p221 = pneg %p123
        $region18: #{tpu_custom_call.1} parent=11 // pred_check_branch
          %223 = sbr.rel (%p221) target = $region20
        $region19: #{tpu_custom_call.1} parent=11 // pred_region
          %s225 = ssub.s32 2048, 2048
          %226 = vsyncadd [#allocation6], %s225
          %s227 = sshll.u32 [#allocation5], 4
          %s228 = int_to_ptr.vmem [resolvable:$true] %s227
          %233 = dma.hbm_to_vmem [thread:$0]  %s3, 2048, %s228, [#allocation6], 128, 128, 8
        $region20: #{tpu_custom_call.1} parent=11 // pred_fallthru
          _
        // Predicated region
        $region21: #{tpu_custom_call.1} parent=11 // pred_check
          %p234 = pneg %p144
        $region22: #{tpu_custom_call.1} parent=11 // pred_check_branch
          %236 = sbr.rel (%p234) target = $region24
        $region23: #{tpu_custom_call.1} parent=11 // pred_region
          %s238 = ssub.s32 2048, 2048
          %239 = vsyncadd [#allocation6], %s238
          %s240 = sshll.u32 [#allocation7], 4
          %s241 = int_to_ptr.vmem [resolvable:$true] %s240
          %246 = dma.hbm_to_vmem [thread:$0]  %s4, 2048, %s241, [#allocation6], 128, 128, 8
        $region24: #{tpu_custom_call.1} parent=11 // pred_fallthru
          _
        // Predicated region
        $region25: #{tpu_custom_call.1} parent=11 // pred_check
          %p247 = pneg %p165
        $region26: #{tpu_custom_call.1} parent=11 // pred_check_branch
          %249 = sbr.rel (%p247) target = $region28
        $region27: #{tpu_custom_call.1} parent=11 // pred_region
          _
        $region28: #{tpu_custom_call.1} parent=11 // pred_fallthru
          _
      $region12: #{tpu_custom_call.1} parent=5 // pred_fallthru
        _
      %p250 = scmp.lt.s32.totalorder %s17, 8
      // Predicated region
      $region29: #{tpu_custom_call.1} parent=5 // pred_check
        %p251 = pneg %p250
      $region30: #{tpu_custom_call.1} parent=5 // pred_check_branch
        %253 = sbr.rel (%p251) target = $region32
      $region31: #{tpu_custom_call.1} parent=5 // pred_region
        // Predicated region
        $region33: #{tpu_custom_call.1} parent=31 // pred_check
          %p254 = pneg %p49
        $region34: #{tpu_custom_call.1} parent=31 // pred_check_branch
          %256 = sbr.rel (%p254) target = $region36
        $region35: #{tpu_custom_call.1} parent=31 // pred_region
          %s257 = smul.u32 8, %s24
          %p258 = scmp.lt.s32.totalorder %s257, 15
          %s259 = scalar_select %p258, %s257, 15
          %s260 = smul.addr %s259, 8
          %s261 = scalar_lea.vmem %s0, %s260
          %s262 = smul.u32 8, %s24
        $region36: #{tpu_custom_call.1} parent=31 // pred_fallthru
          _
        // Predicated region
        $region37: #{tpu_custom_call.1} parent=31 // pred_check
          %p263 = pneg %p75
        $region38: #{tpu_custom_call.1} parent=31 // pred_check_branch
          %265 = sbr.rel (%p263) target = $region40
        $region39: #{tpu_custom_call.1} parent=31 // pred_region
          %p266 = scmp.lt.s32.totalorder %s25, 3
          %s267 = scalar_select %p266, %s25, 3
          %s268 = smul.addr %s267, 4
          %s269 = smul.addr %s268, 8
          %s270 = scalar_lea.vmem %s1, %s269
        $region40: #{tpu_custom_call.1} parent=31 // pred_fallthru
          _
      $region32: #{tpu_custom_call.1} parent=5 // pred_fallthru
        _
      %p271 = scmp.le.s32.totalorder 1, %s17
      %p272 = scmp.lt.s32.totalorder %s17, 9
      %p273 = pnand %p271, %p272
      %p274 = pneg %p273
      // Predicated region
      $region41: #{tpu_custom_call.1} parent=5 // pred_check
        _
      $region42: #{tpu_custom_call.1} parent=5 // pred_check_branch
        %276 = sbr.rel (%p273) target = $region44
      $region43: #{tpu_custom_call.1} parent=5 // pred_region
        %s277 = ssub.s32 %s17, 1
        // Predicated region
        $region45: #{tpu_custom_call.1} parent=43 // pred_check
          %p278 = pneg %p102
        $region46: #{tpu_custom_call.1} parent=43 // pred_check_branch
          %280 = sbr.rel (%p278) target = $region48
        $region47: #{tpu_custom_call.1} parent=43 // pred_region
          %281 = dma.done [#allocation3], 2048
        $region48: #{tpu_custom_call.1} parent=43 // pred_fallthru
          _
        // Predicated region
        $region49: #{tpu_custom_call.1} parent=43 // pred_check
          %p282 = pneg %p123
        $region50: #{tpu_custom_call.1} parent=43 // pred_check_branch
          %284 = sbr.rel (%p282) target = $region52
        $region51: #{tpu_custom_call.1} parent=43 // pred_region
          %285 = dma.done [#allocation6], 2048
        $region52: #{tpu_custom_call.1} parent=43 // pred_fallthru
          _
        // Predicated region
        $region53: #{tpu_custom_call.1} parent=43 // pred_check
          %p286 = pneg %p144
        $region54: #{tpu_custom_call.1} parent=43 // pred_check_branch
          %288 = sbr.rel (%p286) target = $region56
        $region55: #{tpu_custom_call.1} parent=43 // pred_region
          %289 = dma.done [#allocation6], 2048
        $region56: #{tpu_custom_call.1} parent=43 // pred_fallthru
          _
        %s290 = smul.u32 8, %s26
        %p291 = scmp.lt.s32.totalorder %s290, 15
        %s292 = scalar_select %p291, %s290, 15
        %s293 = smul.addr %s292, 8
        %s294 = scalar_lea.vmem %s0, %s293
        %p295 = pneg %p55
        %p296 = pneg %p52
        %p297 = scmp.lt.s32.totalorder %s27, 3
        %s298 = scalar_select %p297, %s27, 3
        %s299 = smul.addr %s298, 4
        %s300 = smul.addr %s299, 8
        %s301 = scalar_lea.vmem %s1, %s300
        %p302 = pneg %p81
        %p303 = pneg %p78
        %p304 = pneg %p102
        %p305 = pneg %p99
        %p306 = pneg %p123
        %p307 = pneg %p120
        %p308 = pneg %p144
        %p309 = pneg %p141
        %p310 = pneg %p165
        %p311 = pneg %p162
        %p312 = pneg %p193
        %p313 = pneg %p190
        %s314 = sand.u32 %s180, 1
        %s315 = scalar_lea.sflag [#allocation4], %s314
        %s316 = sand.u32 %s180, 1
        %s317 = smul.addr %s316, 64
        %s318 = scalar_lea.vmem [#allocation8], %s317
        %s319 = smul.u32 8, %s26
        %p320 = scmp.lt.s32.totalorder %s319, 15
        %s321 = scalar_select %p320, %s319, 15
        %s322 = smul.addr %s321, 8
        %s323 = scalar_lea.vmem %s0, %s322
        %s324 = smul.u32 8, %s26
        %p325 = scmp.lt.s32.totalorder %s27, 3
        %s326 = scalar_select %p325, %s27, 3
        %s327 = smul.addr %s326, 4
        %s328 = smul.addr %s327, 8
        %s329 = scalar_lea.vmem %s1, %s328
        %s330 = smul.u32 8, %s26
        %v331 = vld [vmem:[%s323] sm:$0xff]
        %v332 = vld [vmem:[%s323 + $0x8] sm:$0xff]
        %v333 = vld [vmem:[%s323 + $0x10] sm:$0xff]
        %v334 = vld [vmem:[%s323 + $0x18] sm:$0xff]
        %v335 = vld [vmem:[%s323 + $0x20] sm:$0xff]
        %v336 = vld [vmem:[%s323 + $0x28] sm:$0xff]
        %v337 = vld [vmem:[%s323 + $0x30] sm:$0xff]
        %v338 = vld [vmem:[%s323 + $0x38] sm:$0xff]
        %v339 = vld [vmem:[%s329] sm:$0xff]
        %v340 = vld [vmem:[%s329 + $0x8] sm:$0xff]
        %v341 = vld [vmem:[%s329 + $0x10] sm:$0xff]
        %v342 = vld [vmem:[%s329 + $0x18] sm:$0xff]
        %vm343 = vcmask 261120
        %v345 = vsel %vm343, %v331, 0
        %v348 = vsel %vm343, %v332, 0
        %v351 = vsel %vm343, %v333, 0
        %v354 = vsel %vm343, %v334, 0
        %v357 = vsel %vm343, %v335, 0
        %v360 = vsel %vm343, %v336, 0
        %v363 = vsel %vm343, %v337, 0
        %v366 = vsel %vm343, %v338, 0
        %368 = vmatprep.subr.mxu0 0.0
        %369 = vmatpush1.msra.mxu0 %v339
        %370 = vmatprep.subr.mxu0 0.0
        %371 = vmatpush1.msra.mxu0 %v340
        %372 = vmatprep.subr.mxu0 0.0
        %373 = vmatpush1.msra.mxu0 %v341
        %374 = vmatprep.subr.mxu0 0.0
        %375 = vmatpush1.msra.mxu0 %v342
        %376 = vmatprep.subr.mxu0 0.0
        %377 = vmatpush1.msra.mxu0 0.0
        %378 = vmatprep.subr.mxu0 0.0
        %379 = vmatpush1.msra.mxu0 0.0
        %380 = vmatprep.subr.mxu0 0.0
        %381 = vmatpush1.msra.mxu0 0.0
        %382 = vmatprep.subr.mxu0 0.0
        %383 = vmatpush1.msra.mxu0 0.0
        %384 = vmatprep.subr.mxu0 0.0
        %385 = vmatpush1.msra.mxu0 0.0
        %386 = vmatprep.subr.mxu0 0.0
        %387 = vmatpush1.msra.mxu0 0.0
        %388 = vmatprep.subr.mxu0 0.0
        %389 = vmatpush1.msra.mxu0 0.0
        %390 = vmatprep.subr.mxu0 0.0
        %391 = vmatpush1.msra.mxu0 0.0
        %392 = vmatprep.subr.mxu0 0.0
        %393 = vmatpush1.msra.mxu0 0.0
        %394 = vmatprep.subr.mxu0 0.0
        %395 = vmatpush1.msra.mxu0 0.0
        %396 = vmatprep.subr.mxu0 0.0
        %397 = vmatpush1.msra.mxu0 0.0
        %398 = vmatprep.subr.mxu0 0.0
        %399 = vmatpush1.msra.mxu0 0.0
        %400 = vmatprep.subr.mxu0 0.0
        %401 = vmatpush1.msra.mxu0 0.0
        %402 = vmatprep.subr.mxu0 0.0
        %403 = vmatpush1.msra.mxu0 0.0
        %404 = vmatprep.subr.mxu0 0.0
        %405 = vmatpush1.msra.mxu0 0.0
        %406 = vmatprep.subr.mxu0 0.0
        %407 = vmatpush1.msra.mxu0 0.0
        %408 = vmatprep.subr.mxu0 0.0
        %409 = vmatpush1.msra.mxu0 0.0
        %410 = vmatprep.subr.mxu0 0.0
        %411 = vmatpush1.msra.mxu0 0.0
        %412 = vmatprep.subr.mxu0 0.0
        %413 = vmatpush1.msra.mxu0 0.0
        %414 = vmatprep.subr.mxu0 0.0
        %415 = vmatpush1.msra.mxu0 0.0
        %416 = vmatprep.subr.mxu0 0.0
        %417 = vmatpush1.msra.mxu0 0.0
        %418 = vmatprep.subr.mxu0 0.0
        %419 = vmatpush1.msra.mxu0 0.0
        %420 = vmatprep.subr.mxu0 0.0
        %421 = vmatpush1.msra.mxu0 0.0
        %422 = vmatprep.subr.mxu0 0.0
        %423 = vmatpush1.msra.mxu0 0.0
        %424 = vmatprep.subr.mxu0 0.0
        %425 = vmatpush1.msra.mxu0 0.0
        %426 = vmatprep.subr.mxu0 0.0
        %427 = vmatpush1.msra.mxu0 0.0
        %428 = vmatprep.subr.mxu0 0.0
        %429 = vmatpush1.msra.mxu0 0.0
        %430 = vmatprep.subr.mxu0 0.0
        %431 = vmatpush1.msra.mxu0 0.0
        %432 = vmatprep.mubr.f32.mxu0 0.0
        %433 = vmatmul.mubr.f32.gmra.mrb[0].mxu0 %v345
        %v434 = vpop.f32.mrb[0].mxu0
        %v435 = vadd.f32 0.0, %v434
        %v436 = vpop.f32.mrb[0].mxu0
        %437 = vmatprep.mubr.f32.mxu0 0.0
        %438 = vmatmul.mubr.f32.gmra.mrb[0].mxu0 %v348
        %v439 = vpop.f32.mrb[0].mxu0
        %v440 = vadd.f32 0.0, %v439
        %v441 = vpop.f32.mrb[0].mxu0
        %442 = vmatprep.mubr.f32.mxu0 0.0
        %443 = vmatmul.mubr.f32.gmra.mrb[0].mxu0 %v351
        %v444 = vpop.f32.mrb[0].mxu0
        %v445 = vadd.f32 0.0, %v444
        %v446 = vpop.f32.mrb[0].mxu0
        %447 = vmatprep.mubr.f32.mxu0 0.0
        %448 = vmatmul.mubr.f32.gmra.mrb[0].mxu0 %v354
        %v449 = vpop.f32.mrb[0].mxu0
        %v450 = vadd.f32 0.0, %v449
        %v451 = vpop.f32.mrb[0].mxu0
        %452 = vmatprep.mubr.f32.mxu0 0.0
        %453 = vmatmul.mubr.f32.gmra.mrb[0].mxu0 %v357
        %v454 = vpop.f32.mrb[0].mxu0
        %v455 = vadd.f32 0.0, %v454
        %v456 = vpop.f32.mrb[0].mxu0
        %457 = vmatprep.mubr.f32.mxu0 0.0
        %458 = vmatmul.mubr.f32.gmra.mrb[0].mxu0 %v360
        %v459 = vpop.f32.mrb[0].mxu0
        %v460 = vadd.f32 0.0, %v459
        %v461 = vpop.f32.mrb[0].mxu0
        %462 = vmatprep.mubr.f32.mxu0 0.0
        %463 = vmatmul.mubr.f32.gmra.mrb[0].mxu0 %v363
        %v464 = vpop.f32.mrb[0].mxu0
        %v465 = vadd.f32 0.0, %v464
        %v466 = vpop.f32.mrb[0].mxu0
        %467 = vmatprep.mubr.f32.mxu0 0.0
        %468 = vmatmul.mubr.f32.gmra.mrb[0].mxu0 %v366
        %v469 = vpop.f32.mrb[0].mxu0
        %v470 = vadd.f32 0.0, %v469
        %v471 = vpop.f32.mrb[0].mxu0
        %472 = vdwg.mxu0
        %v473 = vld [vmem:[#allocation2] sm:$0xff]
        %v474 = vld [vmem:[#allocation2 + $0x8] sm:$0xff]
        %v475 = vld [vmem:[#allocation2 + $0x10] sm:$0xff]
        %v476 = vld [vmem:[#allocation2 + $0x18] sm:$0xff]
        %v477 = vld [vmem:[#allocation2 + $0x20] sm:$0xff]
        %v478 = vld [vmem:[#allocation2 + $0x28] sm:$0xff]
        %v479 = vld [vmem:[#allocation2 + $0x30] sm:$0xff]
        %v480 = vld [vmem:[#allocation2 + $0x38] sm:$0xff]
        %v481 = vld [vmem:[#allocation2 + $0x40] sm:$0xff]
        %v482 = vld [vmem:[#allocation2 + $0x48] sm:$0xff]
        %v483 = vld [vmem:[#allocation2 + $0x50] sm:$0xff]
        %v484 = vld [vmem:[#allocation2 + $0x58] sm:$0xff]
        %v485 = vld [vmem:[#allocation2 + $0x60] sm:$0xff]
        %v486 = vld [vmem:[#allocation2 + $0x68] sm:$0xff]
        %v487 = vld [vmem:[#allocation2 + $0x70] sm:$0xff]
        %v488 = vld [vmem:[#allocation2 + $0x78] sm:$0xff]
        %489 = vmatprep.subr.mxu0 0.0
        %490 = vmatpush1.msra.mxu0 %v473
        %491 = vmatprep.subr.mxu0 0.0
        %492 = vmatpush1.msra.mxu0 %v474
        %493 = vmatprep.subr.mxu0 0.0
        %494 = vmatpush1.msra.mxu0 %v475
        %495 = vmatprep.subr.mxu0 0.0
        %496 = vmatpush1.msra.mxu0 %v476
        %497 = vmatprep.subr.mxu0 0.0
        %498 = vmatpush1.msra.mxu0 %v477
        %499 = vmatprep.subr.mxu0 0.0
        %500 = vmatpush1.msra.mxu0 %v478
        %501 = vmatprep.subr.mxu0 0.0
        %502 = vmatpush1.msra.mxu0 %v479
        %503 = vmatprep.subr.mxu0 0.0
        %504 = vmatpush1.msra.mxu0 %v480
        %505 = vmatprep.subr.mxu0 0.0
        %506 = vmatpush1.msra.mxu0 %v481
        %507 = vmatprep.subr.mxu0 0.0
        %508 = vmatpush1.msra.mxu0 %v482
        %509 = vmatprep.subr.mxu0 0.0
        %510 = vmatpush1.msra.mxu0 %v483
        %511 = vmatprep.subr.mxu0 0.0
        %512 = vmatpush1.msra.mxu0 %v484
        %513 = vmatprep.subr.mxu0 0.0
        %514 = vmatpush1.msra.mxu0 %v485
        %515 = vmatprep.subr.mxu0 0.0
        %516 = vmatpush1.msra.mxu0 %v486
        %517 = vmatprep.subr.mxu0 0.0
        %518 = vmatpush1.msra.mxu0 %v487
        %519 = vmatprep.subr.mxu0 0.0
        %520 = vmatpush1.msra.mxu0 %v488
        %521 = vmatprep.subr.mxu0 0.0
        %522 = vmatpush1.msra.mxu0 0.0
        %523 = vmatprep.subr.mxu0 0.0
        %524 = vmatpush1.msra.mxu0 0.0
        %525 = vmatprep.subr.mxu0 0.0
        %526 = vmatpush1.msra.mxu0 0.0
        %527 = vmatprep.subr.mxu0 0.0
        %528 = vmatpush1.msra.mxu0 0.0
        %529 = vmatprep.subr.mxu0 0.0
        %530 = vmatpush1.msra.mxu0 0.0
        %531 = vmatprep.subr.mxu0 0.0
        %532 = vmatpush1.msra.mxu0 0.0
        %533 = vmatprep.subr.mxu0 0.0
        %534 = vmatpush1.msra.mxu0 0.0
        %535 = vmatprep.subr.mxu0 0.0
        %536 = vmatpush1.msra.mxu0 0.0
        %537 = vmatprep.subr.mxu0 0.0
        %538 = vmatpush1.msra.mxu0 0.0
        %539 = vmatprep.subr.mxu0 0.0
        %540 = vmatpush1.msra.mxu0 0.0
        %541 = vmatprep.subr.mxu0 0.0
        %542 = vmatpush1.msra.mxu0 0.0
        %543 = vmatprep.subr.mxu0 0.0
        %544 = vmatpush1.msra.mxu0 0.0
        %545 = vmatprep.subr.mxu0 0.0
        %546 = vmatpush1.msra.mxu0 0.0
        %547 = vmatprep.subr.mxu0 0.0
        %548 = vmatpush1.msra.mxu0 0.0
        %549 = vmatprep.subr.mxu0 0.0
        %550 = vmatpush1.msra.mxu0 0.0
        %551 = vmatprep.subr.mxu0 0.0
        %552 = vmatpush1.msra.mxu0 0.0
        %553 = vmatprep.mubr.f32.mxu0 0.0
        %554 = vmatmul.mubr.f32.gmra.mrb[0].mxu0 %v435
        %v555 = vpop.f32.mrb[0].mxu0
        %v556 = vadd.f32 0.0, %v555
        %v557 = vpop.f32.mrb[0].mxu0
        %558 = vmatprep.mubr.f32.mxu0 0.0
        %559 = vmatmul.mubr.f32.gmra.mrb[0].mxu0 %v440
        %v560 = vpop.f32.mrb[0].mxu0
        %v561 = vadd.f32 0.0, %v560
        %v562 = vpop.f32.mrb[0].mxu0
        %563 = vmatprep.mubr.f32.mxu0 0.0
        %564 = vmatmul.mubr.f32.gmra.mrb[0].mxu0 %v445
        %v565 = vpop.f32.mrb[0].mxu0
        %v566 = vadd.f32 0.0, %v565
        %v567 = vpop.f32.mrb[0].mxu0
        %568 = vmatprep.mubr.f32.mxu0 0.0
        %569 = vmatmul.mubr.f32.gmra.mrb[0].mxu0 %v450
        %v570 = vpop.f32.mrb[0].mxu0
        %v571 = vadd.f32 0.0, %v570
        %v572 = vpop.f32.mrb[0].mxu0
        %573 = vmatprep.mubr.f32.mxu0 0.0
        %574 = vmatmul.mubr.f32.gmra.mrb[0].mxu0 %v455
        %v575 = vpop.f32.mrb[0].mxu0
        %v576 = vadd.f32 0.0, %v575
        %v577 = vpop.f32.mrb[0].mxu0
        %578 = vmatprep.mubr.f32.mxu0 0.0
        %579 = vmatmul.mubr.f32.gmra.mrb[0].mxu0 %v460
        %v580 = vpop.f32.mrb[0].mxu0
        %v581 = vadd.f32 0.0, %v580
        %v582 = vpop.f32.mrb[0].mxu0
        %583 = vmatprep.mubr.f32.mxu0 0.0
        %584 = vmatmul.mubr.f32.gmra.mrb[0].mxu0 %v465
        %v585 = vpop.f32.mrb[0].mxu0
        %v586 = vadd.f32 0.0, %v585
        %v587 = vpop.f32.mrb[0].mxu0
        %588 = vmatprep.mubr.f32.mxu0 0.0
        %589 = vmatmul.mubr.f32.gmra.mrb[0].mxu0 %v470
        %v590 = vpop.f32.mrb[0].mxu0
        %v591 = vadd.f32 0.0, %v590
        %v592 = vpop.f32.mrb[0].mxu0
        %593 = vdwg.mxu0
        %v594 = vld [vmem:[#allocation5] sm:$0xff]
        %v595 = vld [vmem:[#allocation5 + $0x8] sm:$0xff]
        %v596 = vld [vmem:[#allocation5 + $0x10] sm:$0xff]
        %v597 = vld [vmem:[#allocation5 + $0x18] sm:$0xff]
        %v598 = vld [vmem:[#allocation5 + $0x20] sm:$0xff]
        %v599 = vld [vmem:[#allocation5 + $0x28] sm:$0xff]
        %v600 = vld [vmem:[#allocation5 + $0x30] sm:$0xff]
        %v601 = vld [vmem:[#allocation5 + $0x38] sm:$0xff]
        %v602 = vld [vmem:[#allocation5 + $0x40] sm:$0xff]
        %v603 = vld [vmem:[#allocation5 + $0x48] sm:$0xff]
        %v604 = vld [vmem:[#allocation5 + $0x50] sm:$0xff]
        %v605 = vld [vmem:[#allocation5 + $0x58] sm:$0xff]
        %v606 = vld [vmem:[#allocation5 + $0x60] sm:$0xff]
        %v607 = vld [vmem:[#allocation5 + $0x68] sm:$0xff]
        %v608 = vld [vmem:[#allocation5 + $0x70] sm:$0xff]
        %v609 = vld [vmem:[#allocation5 + $0x78] sm:$0xff]
        %610 = vmatprep.subr.mxu0 0.0
        %611 = vmatpush1.msra.mxu0 %v594
        %612 = vmatprep.subr.mxu0 0.0
        %613 = vmatpush1.msra.mxu0 %v595
        %614 = vmatprep.subr.mxu0 0.0
        %615 = vmatpush1.msra.mxu0 %v596
        %616 = vmatprep.subr.mxu0 0.0
        %617 = vmatpush1.msra.mxu0 %v597
        %618 = vmatprep.subr.mxu0 0.0
        %619 = vmatpush1.msra.mxu0 %v598
        %620 = vmatprep.subr.mxu0 0.0
        %621 = vmatpush1.msra.mxu0 %v599
        %622 = vmatprep.subr.mxu0 0.0
        %623 = vmatpush1.msra.mxu0 %v600
        %624 = vmatprep.subr.mxu0 0.0
        %625 = vmatpush1.msra.mxu0 %v601
        %626 = vmatprep.subr.mxu0 0.0
        %627 = vmatpush1.msra.mxu0 %v602
        %628 = vmatprep.subr.mxu0 0.0
        %629 = vmatpush1.msra.mxu0 %v603
        %630 = vmatprep.subr.mxu0 0.0
        %631 = vmatpush1.msra.mxu0 %v604
        %632 = vmatprep.subr.mxu0 0.0
        %633 = vmatpush1.msra.mxu0 %v605
        %634 = vmatprep.subr.mxu0 0.0
        %635 = vmatpush1.msra.mxu0 %v606
        %636 = vmatprep.subr.mxu0 0.0
        %637 = vmatpush1.msra.mxu0 %v607
        %638 = vmatprep.subr.mxu0 0.0
        %639 = vmatpush1.msra.mxu0 %v608
        %640 = vmatprep.subr.mxu0 0.0
        %641 = vmatpush1.msra.mxu0 %v609
        %642 = vmatprep.subr.mxu0 0.0
        %643 = vmatpush1.msra.mxu0 0.0
        %644 = vmatprep.subr.mxu0 0.0
        %645 = vmatpush1.msra.mxu0 0.0
        %646 = vmatprep.subr.mxu0 0.0
        %647 = vmatpush1.msra.mxu0 0.0
        %648 = vmatprep.subr.mxu0 0.0
        %649 = vmatpush1.msra.mxu0 0.0
        %650 = vmatprep.subr.mxu0 0.0
        %651 = vmatpush1.msra.mxu0 0.0
        %652 = vmatprep.subr.mxu0 0.0
        %653 = vmatpush1.msra.mxu0 0.0
        %654 = vmatprep.subr.mxu0 0.0
        %655 = vmatpush1.msra.mxu0 0.0
        %656 = vmatprep.subr.mxu0 0.0
        %657 = vmatpush1.msra.mxu0 0.0
        %658 = vmatprep.subr.mxu0 0.0
        %659 = vmatpush1.msra.mxu0 0.0
        %660 = vmatprep.subr.mxu0 0.0
        %661 = vmatpush1.msra.mxu0 0.0
        %662 = vmatprep.subr.mxu0 0.0
        %663 = vmatpush1.msra.mxu0 0.0
        %664 = vmatprep.subr.mxu0 0.0
        %665 = vmatpush1.msra.mxu0 0.0
        %666 = vmatprep.subr.mxu0 0.0
        %667 = vmatpush1.msra.mxu0 0.0
        %668 = vmatprep.subr.mxu0 0.0
        %669 = vmatpush1.msra.mxu0 0.0
        %670 = vmatprep.subr.mxu0 0.0
        %671 = vmatpush1.msra.mxu0 0.0
        %672 = vmatprep.subr.mxu0 0.0
        %673 = vmatpush1.msra.mxu0 0.0
        %674 = vmatprep.mubr.f32.mxu0 0.0
        %675 = vmatmul.mubr.f32.gmra.mrb[0].mxu0 %v556
        %v676 = vpop.f32.mrb[0].mxu0
        %v677 = vadd.f32 0.0, %v676
        %v678 = vpop.f32.mrb[0].mxu0
        %679 = vmatprep.mubr.f32.mxu0 0.0
        %680 = vmatmul.mubr.f32.gmra.mrb[0].mxu0 %v561
        %v681 = vpop.f32.mrb[0].mxu0
        %v682 = vadd.f32 0.0, %v681
        %v683 = vpop.f32.mrb[0].mxu0
        %684 = vmatprep.mubr.f32.mxu0 0.0
        %685 = vmatmul.mubr.f32.gmra.mrb[0].mxu0 %v566
        %v686 = vpop.f32.mrb[0].mxu0
        %v687 = vadd.f32 0.0, %v686
        %v688 = vpop.f32.mrb[0].mxu0
        %689 = vmatprep.mubr.f32.mxu0 0.0
        %690 = vmatmul.mubr.f32.gmra.mrb[0].mxu0 %v571
        %v691 = vpop.f32.mrb[0].mxu0
        %v692 = vadd.f32 0.0, %v691
        %v693 = vpop.f32.mrb[0].mxu0
        %694 = vmatprep.mubr.f32.mxu0 0.0
        %695 = vmatmul.mubr.f32.gmra.mrb[0].mxu0 %v576
        %v696 = vpop.f32.mrb[0].mxu0
        %v697 = vadd.f32 0.0, %v696
        %v698 = vpop.f32.mrb[0].mxu0
        %699 = vmatprep.mubr.f32.mxu0 0.0
        %700 = vmatmul.mubr.f32.gmra.mrb[0].mxu0 %v581
        %v701 = vpop.f32.mrb[0].mxu0
        %v702 = vadd.f32 0.0, %v701
        %v703 = vpop.f32.mrb[0].mxu0
        %704 = vmatprep.mubr.f32.mxu0 0.0
        %705 = vmatmul.mubr.f32.gmra.mrb[0].mxu0 %v586
        %v706 = vpop.f32.mrb[0].mxu0
        %v707 = vadd.f32 0.0, %v706
        %v708 = vpop.f32.mrb[0].mxu0
        %709 = vmatprep.mubr.f32.mxu0 0.0
        %710 = vmatmul.mubr.f32.gmra.mrb[0].mxu0 %v591
        %v711 = vpop.f32.mrb[0].mxu0
        %v712 = vadd.f32 0.0, %v711
        %v713 = vpop.f32.mrb[0].mxu0
        %714 = vdwg.mxu0
        %v715 = vsub.f32 %v435, %v677
        %v716 = vsub.f32 %v440, %v682
        %v717 = vsub.f32 %v445, %v687
        %v718 = vsub.f32 %v450, %v692
        %v719 = vsub.f32 %v455, %v697
        %v720 = vsub.f32 %v460, %v702
        %v721 = vsub.f32 %v465, %v707
        %v722 = vsub.f32 %v470, %v712
        %v723 = vmul.f32 %v715, %v715
        %v724 = vmul.f32 %v716, %v716
        %v725 = vmul.f32 %v717, %v717
        %v726 = vmul.f32 %v718, %v718
        %v727 = vmul.f32 %v719, %v719
        %v728 = vmul.f32 %v720, %v720
        %v729 = vmul.f32 %v721, %v721
        %v730 = vmul.f32 %v722, %v722
        %731 = vmatprep.subr.mxu0 0.0
        %732 = vmatpush1.msra.mxu0 %v473
        %733 = vmatprep.subr.mxu0 0.0
        %734 = vmatpush1.msra.mxu0 %v474
        %735 = vmatprep.subr.mxu0 0.0
        %736 = vmatpush1.msra.mxu0 %v475
        %737 = vmatprep.subr.mxu0 0.0
        %738 = vmatpush1.msra.mxu0 %v476
        %739 = vmatprep.subr.mxu0 0.0
        %740 = vmatpush1.msra.mxu0 %v477
        %741 = vmatprep.subr.mxu0 0.0
        %742 = vmatpush1.msra.mxu0 %v478
        %743 = vmatprep.subr.mxu0 0.0
        %744 = vmatpush1.msra.mxu0 %v479
        %745 = vmatprep.subr.mxu0 0.0
        %746 = vmatpush1.msra.mxu0 %v480
        %747 = vmatprep.subr.mxu0 0.0
        %748 = vmatpush1.msra.mxu0 %v481
        %749 = vmatprep.subr.mxu0 0.0
        %750 = vmatpush1.msra.mxu0 %v482
        %751 = vmatprep.subr.mxu0 0.0
        %752 = vmatpush1.msra.mxu0 %v483
        %753 = vmatprep.subr.mxu0 0.0
        %754 = vmatpush1.msra.mxu0 %v484
        %755 = vmatprep.subr.mxu0 0.0
        %756 = vmatpush1.msra.mxu0 %v485
        %757 = vmatprep.subr.mxu0 0.0
        %758 = vmatpush1.msra.mxu0 %v486
        %759 = vmatprep.subr.mxu0 0.0
        %760 = vmatpush1.msra.mxu0 %v487
        %761 = vmatprep.subr.mxu0 0.0
        %762 = vmatpush1.msra.mxu0 %v488
        %763 = vmatprep.subr.mxu0 0.0
        %764 = vmatpush1.msra.mxu0 0.0
        %765 = vmatprep.subr.mxu0 0.0
        %766 = vmatpush1.msra.mxu0 0.0
        %767 = vmatprep.subr.mxu0 0.0
        %768 = vmatpush1.msra.mxu0 0.0
        %769 = vmatprep.subr.mxu0 0.0
        %770 = vmatpush1.msra.mxu0 0.0
        %771 = vmatprep.subr.mxu0 0.0
        %772 = vmatpush1.msra.mxu0 0.0
        %773 = vmatprep.subr.mxu0 0.0
        %774 = vmatpush1.msra.mxu0 0.0
        %775 = vmatprep.subr.mxu0 0.0
        %776 = vmatpush1.msra.mxu0 0.0
        %777 = vmatprep.subr.mxu0 0.0
        %778 = vmatpush1.msra.mxu0 0.0
        %779 = vmatprep.subr.mxu0 0.0
        %780 = vmatpush1.msra.mxu0 0.0
        %781 = vmatprep.subr.mxu0 0.0
        %782 = vmatpush1.msra.mxu0 0.0
        %783 = vmatprep.subr.mxu0 0.0
        %784 = vmatpush1.msra.mxu0 0.0
        %785 = vmatprep.subr.mxu0 0.0
        %786 = vmatpush1.msra.mxu0 0.0
        %787 = vmatprep.subr.mxu0 0.0
        %788 = vmatpush1.msra.mxu0 0.0
        %789 = vmatprep.subr.mxu0 0.0
        %790 = vmatpush1.msra.mxu0 0.0
        %791 = vmatprep.subr.mxu0 0.0
        %792 = vmatpush1.msra.mxu0 0.0
        %793 = vmatprep.subr.mxu0 0.0
        %794 = vmatpush1.msra.mxu0 0.0
        %795 = vmatprep.mubr.f32.mxu0 0.0
        %796 = vmatmul.mubr.f32.gmra.mrb[0].mxu0 %v723
        %v797 = vpop.f32.mrb[0].mxu0
        %v798 = vadd.f32 1e-05, %v797
        %v799 = vpop.f32.mrb[0].mxu0
        %800 = vmatprep.mubr.f32.mxu0 0.0
        %801 = vmatmul.mubr.f32.gmra.mrb[0].mxu0 %v724
        %v802 = vpop.f32.mrb[0].mxu0
        %v803 = vadd.f32 1e-05, %v802
        %v804 = vpop.f32.mrb[0].mxu0
        %805 = vmatprep.mubr.f32.mxu0 0.0
        %806 = vmatmul.mubr.f32.gmra.mrb[0].mxu0 %v725
        %v807 = vpop.f32.mrb[0].mxu0
        %v808 = vadd.f32 1e-05, %v807
        %v809 = vpop.f32.mrb[0].mxu0
        %810 = vmatprep.mubr.f32.mxu0 0.0
        %811 = vmatmul.mubr.f32.gmra.mrb[0].mxu0 %v726
        %v812 = vpop.f32.mrb[0].mxu0
        %v813 = vadd.f32 1e-05, %v812
        %v814 = vpop.f32.mrb[0].mxu0
        %815 = vmatprep.mubr.f32.mxu0 0.0
        %816 = vmatmul.mubr.f32.gmra.mrb[0].mxu0 %v727
        %v817 = vpop.f32.mrb[0].mxu0
        %v818 = vadd.f32 1e-05, %v817
        %v819 = vpop.f32.mrb[0].mxu0
        %820 = vmatprep.mubr.f32.mxu0 0.0
        %821 = vmatmul.mubr.f32.gmra.mrb[0].mxu0 %v728
        %v822 = vpop.f32.mrb[0].mxu0
        %v823 = vadd.f32 1e-05, %v822
        %v824 = vpop.f32.mrb[0].mxu0
        %825 = vmatprep.mubr.f32.mxu0 0.0
        %826 = vmatmul.mubr.f32.gmra.mrb[0].mxu0 %v729
        %v827 = vpop.f32.mrb[0].mxu0
        %v828 = vadd.f32 1e-05, %v827
        %v829 = vpop.f32.mrb[0].mxu0
        %830 = vmatprep.mubr.f32.mxu0 0.0
        %831 = vmatmul.mubr.f32.gmra.mrb[0].mxu0 %v730
        %v832 = vpop.f32.mrb[0].mxu0
        %v833 = vadd.f32 1e-05, %v832
        %v834 = vpop.f32.mrb[0].mxu0
        %835 = vdwg.mxu0
        %v836 = vrsqrt.pop %v798
        %v837 = vrsqrt.pop %v803
        %v838 = vrsqrt.pop %v808
        %v839 = vrsqrt.pop %v813
        %v840 = vrsqrt.pop %v818
        %v841 = vrsqrt.pop %v823
        %v842 = vrsqrt.pop %v828
        %v843 = vrsqrt.pop %v833
        %v844 = vld [vmem:[#allocation7] sm:$0xff]
        %v845 = vld [vmem:[#allocation7 + $0x8] sm:$0xff]
        %v846 = vld [vmem:[#allocation7 + $0x10] sm:$0xff]
        %v847 = vld [vmem:[#allocation7 + $0x18] sm:$0xff]
        %v848 = vld [vmem:[#allocation7 + $0x20] sm:$0xff]
        %v849 = vld [vmem:[#allocation7 + $0x28] sm:$0xff]
        %v850 = vld [vmem:[#allocation7 + $0x30] sm:$0xff]
        %v851 = vld [vmem:[#allocation7 + $0x38] sm:$0xff]
        %v852 = vld [vmem:[#allocation7 + $0x40] sm:$0xff]
        %v853 = vld [vmem:[#allocation7 + $0x48] sm:$0xff]
        %v854 = vld [vmem:[#allocation7 + $0x50] sm:$0xff]
        %v855 = vld [vmem:[#allocation7 + $0x58] sm:$0xff]
        %v856 = vld [vmem:[#allocation7 + $0x60] sm:$0xff]
        %v857 = vld [vmem:[#allocation7 + $0x68] sm:$0xff]
        %v858 = vld [vmem:[#allocation7 + $0x70] sm:$0xff]
        %v859 = vld [vmem:[#allocation7 + $0x78] sm:$0xff]
        %860 = vmatprep.subr.mxu0 0.0
        %861 = vmatpush1.msra.mxu0 %v844
        %862 = vmatprep.subr.mxu0 0.0
        %863 = vmatpush1.msra.mxu0 %v845
        %864 = vmatprep.subr.mxu0 0.0
        %865 = vmatpush1.msra.mxu0 %v846
        %866 = vmatprep.subr.mxu0 0.0
        %867 = vmatpush1.msra.mxu0 %v847
        %868 = vmatprep.subr.mxu0 0.0
        %869 = vmatpush1.msra.mxu0 %v848
        %870 = vmatprep.subr.mxu0 0.0
        %871 = vmatpush1.msra.mxu0 %v849
        %872 = vmatprep.subr.mxu0 0.0
        %873 = vmatpush1.msra.mxu0 %v850
        %874 = vmatprep.subr.mxu0 0.0
        %875 = vmatpush1.msra.mxu0 %v851
        %876 = vmatprep.subr.mxu0 0.0
        %877 = vmatpush1.msra.mxu0 %v852
        %878 = vmatprep.subr.mxu0 0.0
        %879 = vmatpush1.msra.mxu0 %v853
        %880 = vmatprep.subr.mxu0 0.0
        %881 = vmatpush1.msra.mxu0 %v854
        %882 = vmatprep.subr.mxu0 0.0
        %883 = vmatpush1.msra.mxu0 %v855
        %884 = vmatprep.subr.mxu0 0.0
        %885 = vmatpush1.msra.mxu0 %v856
        %886 = vmatprep.subr.mxu0 0.0
        %887 = vmatpush1.msra.mxu0 %v857
        %888 = vmatprep.subr.mxu0 0.0
        %889 = vmatpush1.msra.mxu0 %v858
        %890 = vmatprep.subr.mxu0 0.0
        %891 = vmatpush1.msra.mxu0 %v859
        %892 = vmatprep.subr.mxu0 0.0
        %893 = vmatpush1.msra.mxu0 0.0
        %894 = vmatprep.subr.mxu0 0.0
        %895 = vmatpush1.msra.mxu0 0.0
        %896 = vmatprep.subr.mxu0 0.0
        %897 = vmatpush1.msra.mxu0 0.0
        %898 = vmatprep.subr.mxu0 0.0
        %899 = vmatpush1.msra.mxu0 0.0
        %900 = vmatprep.subr.mxu0 0.0
        %901 = vmatpush1.msra.mxu0 0.0
        %902 = vmatprep.subr.mxu0 0.0
        %903 = vmatpush1.msra.mxu0 0.0
        %904 = vmatprep.subr.mxu0 0.0
        %905 = vmatpush1.msra.mxu0 0.0
        %906 = vmatprep.subr.mxu0 0.0
        %907 = vmatpush1.msra.mxu0 0.0
        %908 = vmatprep.subr.mxu0 0.0
        %909 = vmatpush1.msra.mxu0 0.0
        %910 = vmatprep.subr.mxu0 0.0
        %911 = vmatpush1.msra.mxu0 0.0
        %912 = vmatprep.subr.mxu0 0.0
        %913 = vmatpush1.msra.mxu0 0.0
        %914 = vmatprep.subr.mxu0 0.0
        %915 = vmatpush1.msra.mxu0 0.0
        %916 = vmatprep.subr.mxu0 0.0
        %917 = vmatpush1.msra.mxu0 0.0
        %918 = vmatprep.subr.mxu0 0.0
        %919 = vmatpush1.msra.mxu0 0.0
        %920 = vmatprep.subr.mxu0 0.0
        %921 = vmatpush1.msra.mxu0 0.0
        %922 = vmatprep.subr.mxu0 0.0
        %923 = vmatpush1.msra.mxu0 0.0
        %924 = vmatprep.mubr.f32.mxu0 0.0
        %925 = vmatmul.mubr.f32.gmra.mrb[0].mxu0 %v836
        %v926 = vpop.f32.mrb[0].mxu0
        %v927 = vadd.f32 0.0, %v926
        %v928 = vpop.f32.mrb[0].mxu0
        %929 = vmatprep.mubr.f32.mxu0 0.0
        %930 = vmatmul.mubr.f32.gmra.mrb[0].mxu0 %v837
        %v931 = vpop.f32.mrb[0].mxu0
        %v932 = vadd.f32 0.0, %v931
        %v933 = vpop.f32.mrb[0].mxu0
        %934 = vmatprep.mubr.f32.mxu0 0.0
        %935 = vmatmul.mubr.f32.gmra.mrb[0].mxu0 %v838
        %v936 = vpop.f32.mrb[0].mxu0
        %v937 = vadd.f32 0.0, %v936
        %v938 = vpop.f32.mrb[0].mxu0
        %939 = vmatprep.mubr.f32.mxu0 0.0
        %940 = vmatmul.mubr.f32.gmra.mrb[0].mxu0 %v839
        %v941 = vpop.f32.mrb[0].mxu0
        %v942 = vadd.f32 0.0, %v941
        %v943 = vpop.f32.mrb[0].mxu0
        %944 = vmatprep.mubr.f32.mxu0 0.0
        %945 = vmatmul.mubr.f32.gmra.mrb[0].mxu0 %v840
        %v946 = vpop.f32.mrb[0].mxu0
        %v947 = vadd.f32 0.0, %v946
        %v948 = vpop.f32.mrb[0].mxu0
        %949 = vmatprep.mubr.f32.mxu0 0.0
        %950 = vmatmul.mubr.f32.gmra.mrb[0].mxu0 %v841
        %v951 = vpop.f32.mrb[0].mxu0
        %v952 = vadd.f32 0.0, %v951
        %v953 = vpop.f32.mrb[0].mxu0
        %954 = vmatprep.mubr.f32.mxu0 0.0
        %955 = vmatmul.mubr.f32.gmra.mrb[0].mxu0 %v842
        %v956 = vpop.f32.mrb[0].mxu0
        %v957 = vadd.f32 0.0, %v956
        %v958 = vpop.f32.mrb[0].mxu0
        %959 = vmatprep.mubr.f32.mxu0 0.0
        %960 = vmatmul.mubr.f32.gmra.mrb[0].mxu0 %v843
        %v961 = vpop.f32.mrb[0].mxu0
        %v962 = vadd.f32 0.0, %v961
        %v963 = vpop.f32.mrb[0].mxu0
        %964 = vdwg.mxu0
        %v965 = vmul.f32 %v715, %v927
        %v966 = vmul.f32 %v716, %v932
        %v967 = vmul.f32 %v717, %v937
        %v968 = vmul.f32 %v718, %v942
        %v969 = vmul.f32 %v719, %v947
        %v970 = vmul.f32 %v720, %v952
        %v971 = vmul.f32 %v721, %v957
        %v972 = vmul.f32 %v722, %v962
        %v973 = vld [vmem:[%s5] sm:$0x1]
        %v975 = vlaneseq
        %v976 = vshrl.u32 %v975, 7
        %v977 = vsub.s32 0, %v976
        %v978 = vrot.slane %v973, %v977
        %v980 = vadd.f32 %v965, %v978
        %v981 = vadd.f32 %v966, %v978
        %v982 = vadd.f32 %v967, %v978
        %v983 = vadd.f32 %v968, %v978
        %v984 = vadd.f32 %v969, %v978
        %v985 = vadd.f32 %v970, %v978
        %v986 = vadd.f32 %v971, %v978
        %v987 = vadd.f32 %v972, %v978
        %988 = vst [vmem:[%s318] sm:$0xff] %v980
        %989 = vst [vmem:[%s318 + $0x8] sm:$0xff] %v981
        %990 = vst [vmem:[%s318 + $0x10] sm:$0xff] %v982
        %991 = vst [vmem:[%s318 + $0x18] sm:$0xff] %v983
        %992 = vst [vmem:[%s318 + $0x20] sm:$0xff] %v984
        %993 = vst [vmem:[%s318 + $0x28] sm:$0xff] %v985
        %994 = vst [vmem:[%s318 + $0x30] sm:$0xff] %v986
        %995 = vst [vmem:[%s318 + $0x38] sm:$0xff] %v987
        %s996 = sand.u32 %s180, 1
        %s997 = scalar_lea.sflag [#allocation4], %s996
        %s998 = sand.u32 %s180, 1
        %s999 = smul.addr %s998, 64
        %s1000 = scalar_lea.vmem [#allocation8], %s999
        // Predicated region
        $region57: #{tpu_custom_call.1} parent=43 // pred_check
          %p1001 = pneg %p190
        $region58: #{tpu_custom_call.1} parent=43 // pred_check_branch
          %1003 = sbr.rel (%p1001) target = $region60
        $region59: #{tpu_custom_call.1} parent=43 // pred_region
          %s1004 = smul.u32 8, %s26
          %s1006 = ssub.s32 1024, 1024
          %1007 = vsyncadd %s997, %s1006
          %s1008 = smul.addr %s1004, 4
          %s1009 = sadd.s32 %s27, %s1008
          %s1010 = smul.addr %s1009, 128
          %s1011 = scalar_lea.hbm %s6, %s1010
          %s1012 = sshll.u32 %s1000, 4
          %s1013 = int_to_ptr.vmem [resolvable:$true] %s1012
          %1018 = dma.vmem_to_hbm [thread:$0]  %s1013, 1024, %s1011, %s997, 128, 512, 8
        $region60: #{tpu_custom_call.1} parent=43 // pred_fallthru
          _
      $region44: #{tpu_custom_call.1} parent=5 // pred_fallthru
        _
      %p1019 = scmp.le.s32.totalorder 2, %s17
      // Predicated region
      $region61: #{tpu_custom_call.1} parent=5 // pred_check
        %p1020 = pneg %p1019
      $region62: #{tpu_custom_call.1} parent=5 // pred_check_branch
        %1022 = sbr.rel (%p1020) target = $region64
      $region63: #{tpu_custom_call.1} parent=5 // pred_region
        %s1023 = ssub.s32 %s17, 2
        // Predicated region
        $region65: #{tpu_custom_call.1} parent=63 // pred_check
          %p1024 = pneg %p196
        $region66: #{tpu_custom_call.1} parent=63 // pred_check_branch
          %1026 = sbr.rel (%p1024) target = $region68
        $region67: #{tpu_custom_call.1} parent=63 // pred_region
          %s1027 = sand.u32 %s181, 1
          %s1028 = scalar_lea.sflag [#allocation4], %s1027
          %s1029 = sand.u32 %s181, 1
          %s1030 = smul.addr %s1029, 64
          %s1031 = scalar_lea.vmem [#allocation8], %s1030
          %1032 = dma.done %s1028, 1024
        $region68: #{tpu_custom_call.1} parent=63 // pred_fallthru
          _
      $region64: #{tpu_custom_call.1} parent=5 // pred_fallthru
        _
    $region6: #{tpu_custom_call.1} parent=1 // loop_footer
      %s21 = sadd.s32 1, %s17
    $region7: #{tpu_custom_call.1} parent=1 // loop_footer_branch
      %16 = sbr.rel target = $region3
    $region8: #{tpu_custom_call.1} parent=1 // loop_exit
      _
    %1033 = vsyncpa [#allocation3], 1
    %s1034 = scalar_lea.sflag [#allocation3], 1
    %1035 = vsyncpa %s1034, 1
    %1036 = vsyncpa [#allocation6], 1
    %1037 = vsyncpa [#allocation4], 1
    %s1038 = scalar_lea.sflag [#allocation4], 1
    %1039 = vsyncpa %s1038, 1

</llo_original>
